<compile_context>
chip_gen: v7x
topology: tpu7x:2x2x1
jax: 0.10.0
libtpu: 0.0.40
codegen_flags: <defaults>
</compile_context>

<pallas_src>
import functools
import math

import jax
import jax.numpy as jnp
from jax import lax
from jax.experimental import pallas as pl
from jax.experimental.pallas import tpu as pltpu


BN_EPS = 1e-5
LEAKY_SLOPE = 0.1  # the module uses nn.LeakyReLU(0.1)

# Rows of the packed (8, R) BN-parameter slab.
_ROW_G1, _ROW_BE1, _ROW_G2, _ROW_BE2 = 0, 1, 2, 3


def _round_up(n, m):
    return (n + m - 1) // m * m


@functools.lru_cache(maxsize=1)
def _vmem_budget_bytes():
    """~75% of this generation's physical VMEM (64 MiB v7x, 128 MiB v5e/v6e)."""
    cap = 64 * 2**20
    try:
        info = pltpu.get_tpu_info()
        cap = int(getattr(info, "vmem_capacity_bytes", cap)) or cap
    except Exception:
        pass
    return int(cap * 3 // 4)


_HAS_BUFFERED = hasattr(pl, "Buffered")


def _spec(block_shape, index_map, buffers=None):
    """BlockSpec with optional N-deep buffering (graceful fallback if absent)."""
    if buffers is not None and _HAS_BUFFERED:
        try:
            return pl.BlockSpec(block_shape, index_map,
                                pipeline_mode=pl.Buffered(buffers))
        except TypeError:
            pass
    return pl.BlockSpec(block_shape, index_map)


# --------------------------------------------------------------------------
# Kernel 1: 1x1 conv (matmul) -> BatchNorm2d -> LeakyReLU(0.1) -> BatchNorm1d
# --------------------------------------------------------------------------
def reduce_bn_kernel(
    x_ref,      # (Bp, Cin)  bf16, rows >= b_valid are zero padding
    w1_ref,     # (Cin, R)   bf16, conv weight transposed
    slab_ref,   # (8, R)     f32, rows = [g1, be1, g2, be2, 0, 0, 0, 0]
    x22_ref,    # (Bp, R)    f32 out: conv + BN2d + LeakyReLU (padded rows zero)
    x23_ref,    # (Bp, R)    f32 out: BatchNorm1d           (padded rows zero)
    x23b_ref,   # (Bp, R)    bf16 out: x23 for the classifier matmul
    *,
    b_valid,    # static: true batch size
):
    b_pad = x_ref.shape[0]
    inv_b = 1.0 / float(b_valid)

    if b_pad != b_valid:
        row = lax.broadcasted_iota(jnp.int32, (b_pad, 1), 0)
        fmask = (row < b_valid).astype(jnp.float32)
    else:
        fmask = None

    def batch_stats(t):
        # `t` must already have zeros in the padded rows.
        m = jnp.sum(t, axis=0, keepdims=True) * inv_b
        c = t - m
        if fmask is not None:
            c = c * fmask
        v = jnp.sum(c * c, axis=0, keepdims=True) * inv_b  # biased variance
        return m, v

    # 1x1 conv == dense matmul on the MXU (bf16 operands, f32 accumulate).
    # Conv bias dropped: cancelled by the training-mode BN mean subtraction.
    h = jnp.dot(x_ref[...], w1_ref[...], preferred_element_type=jnp.float32)

    # BatchNorm2d (training mode; H=W=1 => stats over the batch axis),
    # folded into a single per-channel scale/shift FMA.
    mean1, var1 = batch_stats(h)
    scale1 = slab_ref[_ROW_G1:_ROW_G1 + 1, :] * lax.rsqrt(var1 + BN_EPS)
    shift1 = slab_ref[_ROW_BE1:_ROW_BE1 + 1, :] - mean1 * scale1
    hn = h * scale1 + shift1

    # LeakyReLU(0.1)
    x22 = jnp.where(hn > 0, hn, LEAKY_SLOPE * hn)
    if fmask is not None:
        x22 = x22 * fmask  # keep padded rows at zero for the BN1d stats
    x22_ref[...] = x22

    # BatchNorm1d (training mode), same fused scale/shift form.
    mean2, var2 = batch_stats(x22)
    scale2 = slab_ref[_ROW_G2:_ROW_G2 + 1, :] * lax.rsqrt(var2 + BN_EPS)
    shift2 = slab_ref[_ROW_BE2:_ROW_BE2 + 1, :] - mean2 * scale2
    x23 = x22 * scale2 + shift2
    if fmask is not None:
        x23 = x23 * fmask  # keep padded rows consistently zero
    x23_ref[...] = x23
    x23b_ref[...] = x23.astype(jnp.bfloat16)


# --------------------------------------------------------------------------
# Kernel 2: classifier (Linear), K-tiled, parallel over K tiles (megacore)
# --------------------------------------------------------------------------
def classifier_kernel(
    x23_ref,   # (Bp, R)    bf16, constant across the grid
    wc_ref,    # (R, TK)    bf16, tile-contiguous classifier weight tile
    bc_ref,    # (1, K_pad) f32,  full bias row (fetched once)
    x24_ref,   # (Bp, TK)   f32,  logits tile
):
    tk = x24_ref.shape[1]
    off = pl.multiple_of(pl.program_id(0) * tk, 128)
    x24_ref[...] = (
        jnp.dot(x23_ref[...], wc_ref[...], preferred_element_type=jnp.float32)
        + bc_ref[:, pl.ds(off, tk)]
    )


# --------------------------------------------------------------------------
# Host-side wrapper
# --------------------------------------------------------------------------
@functools.partial(jax.jit, static_argnames=("num_classes",))
def conv_bn_forward(x, params, num_classes):
    """x: (B, input_dim) float32.  Returns (x2_2, x2_3, x2_4) like Conv_BN.forward."""
    w1_t, slab, wc_blk, bc = params
    B, Cin = x.shape
    R = w1_t.shape[1]
    NK, R2, TK = wc_blk.shape
    K_pad = NK * TK
    assert R2 == R and num_classes <= K_pad

    # Pad the batch (sublane axis) to a multiple of 8; padded rows are zero and
    # excluded from the BN statistics inside the kernel.
    # TODO(synk): very large batches would need a two-pass (stats then apply)
    # structure; the whole batch is currently one VMEM-resident block.
    Bp = max(8, _round_up(B, 8))
    if Bp != B:
        x = jnp.pad(x, ((0, Bp - B), (0, 0)))
    xb = x.astype(jnp.bfloat16)  # bf16 MXU operand; halves input HBM traffic

    vmem_limit = _vmem_budget_bytes()

    # ---- call 1: conv + BN2d + LeakyReLU + BN1d (single block, cheap) ------
    x22p, x23p, x23b = pl.pallas_call(
        functools.partial(reduce_bn_kernel, b_valid=B),
        out_shape=(
            jax.ShapeDtypeStruct((Bp, R), jnp.float32),
            jax.ShapeDtypeStruct((Bp, R), jnp.float32),
            jax.ShapeDtypeStruct((Bp, R), jnp.bfloat16),
        ),
        grid=(1,),
        in_specs=[
            pl.BlockSpec((Bp, Cin), lambda i: (0, 0)),
            pl.BlockSpec((Cin, R), lambda i: (0, 0)),
            pl.BlockSpec((8, R), lambda i: (0, 0)),
        ],
        out_specs=[
            pl.BlockSpec((Bp, R), lambda i: (0, 0)),
            pl.BlockSpec((Bp, R), lambda i: (0, 0)),
            pl.BlockSpec((Bp, R), lambda i: (0, 0)),
        ],
        compiler_params=pltpu.CompilerParams(
            dimension_semantics=("arbitrary",),
            vmem_limit_bytes=vmem_limit,
        ),
    )(xb, w1_t, slab)

    # ---- call 2: K-tiled classifier, independent tiles -> megacore-parallel -
    wc_buffers = max(1, min(3, NK))
    x24p = pl.pallas_call(
        classifier_kernel,
        out_shape=jax.ShapeDtypeStruct((Bp, K_pad), jnp.float32),
        grid=(NK,),
        in_specs=[
            _spec((Bp, R), lambda k: (0, 0), buffers=1),            # constant
            _spec((None, R, TK), lambda k: (k, 0, 0), buffers=wc_buffers),
            _spec((1, K_pad), lambda k: (0, 0), buffers=1),          # constant
        ],
        out_specs=pl.BlockSpec((Bp, TK), lambda k: (0, k)),
        compiler_params=pltpu.CompilerParams(
            dimension_semantics=("parallel",),
            vmem_limit_bytes=vmem_limit,
        ),
    )(x23b, wc_blk, bc)

    # Strip batch / class padding.
    return x22p[:B], x23p[:B], x24p[:B, :num_classes]


def init_params(key, input_dim, num_classes, num_reduction):
    """Kernel-layout parameters mirroring the PyTorch module's init scheme."""
    k_conv, k_bn1g, k_cls = jax.random.split(key, 3)

    # Conv2d(input_dim, num_reduction, 1, bias=True): kaiming_normal fan_in,
    # bias = 0.  The conv bias is dropped entirely: it is cancelled by the
    # following training-mode BatchNorm2d mean subtraction.
    std_conv = (2.0 / input_dim) ** 0.5
    w1 = std_conv * jax.random.normal(k_conv, (num_reduction, input_dim), jnp.float32)
    w1_t = w1.T.astype(jnp.bfloat16)  # (Cin, R), MXU-native

    # Packed (8, R) slab of per-channel BN parameters (one DMA instead of four):
    #   row 0: BatchNorm2d gamma ~ N(1, 0.02)   (weights_init_kaiming)
    #   row 1: BatchNorm2d beta  = 0
    #   row 2: BatchNorm1d gamma = 1            (PyTorch default init)
    #   row 3: BatchNorm1d beta  = 0
    g1 = 1.0 + 0.02 * jax.random.normal(k_bn1g, (num_reduction,), jnp.float32)
    slab = jnp.zeros((8, num_reduction), jnp.float32)
    slab = slab.at[_ROW_G1].set(g1)
    slab = slab.at[_ROW_G2].set(1.0)

    # Linear classifier: weight ~ N(0, 0.001), bias = 0 (weights_init_classifier).
    # K is padded to a multiple of 512 for big lane-dense DMA tiles; the weight
    # is stored tile-contiguous as (NK, R, TK) so each grid step's DMA is one
    # contiguous slab.  Padded columns (zero weight/bias) are sliced off in the
    # wrapper.
    K_pad = max(512, _round_up(num_classes, 512))
    TK = 1024 if K_pad % 1024 == 0 else 512
    NK = K_pad // TK
    wc = 0.001 * jax.random.normal(k_cls, (num_classes, num_reduction), jnp.float32)
    wc_full = jnp.zeros((num_reduction, K_pad), jnp.float32).at[:, :num_classes].set(wc.T)
    wc_blk = (
        wc_full.reshape(num_reduction, NK, TK).transpose(1, 0, 2).astype(jnp.bfloat16)
    )  # (NK, R, TK)
    bc = jnp.zeros((1, K_pad), jnp.float32)

    return (w1_t, slab, wc_blk, bc)


def reference_forward(x, params, num_classes):
    """Pure-JAX f32 reference (training-mode BN) using the same stored weights."""
    w1_t, slab, wc_blk, bc = params
    w1 = w1_t.astype(jnp.float32)
    g1, be1, g2, be2 = slab[0], slab[1], slab[2], slab[3]
    NK, R, TK = wc_blk.shape
    wc_full = wc_blk.astype(jnp.float32).transpose(1, 0, 2).reshape(R, NK * TK)

    h = x @ w1
    hn = (h - h.mean(0)) / jnp.sqrt(h.var(0) + BN_EPS) * g1 + be1
    x22 = jnp.where(hn > 0, hn, LEAKY_SLOPE * hn)
    x23 = (x22 - x22.mean(0)) / jnp.sqrt(x22.var(0) + BN_EPS) * g2 + be2
    x24 = x23 @ wc_full + bc[0]
    return x22, x23, x24[:, :num_classes]


if __name__ == "__main__":
    B = 6                # deliberately not a multiple of 8: exercises pad + masked BN stats
    input_dim = 64
    num_reduction = 256  # small stand-in for the default 512 (lane-aligned)
    num_classes = 10

    key = jax.random.PRNGKey(0)
    k_x, k_p = jax.random.split(key)
    x = jax.random.normal(k_x, (B, input_dim), dtype=jnp.float32)
    params = init_params(k_p, input_dim, num_classes, num_reduction)

    x2_2, x2_3, x2_4 = conv_bn_forward(x, params, num_classes)
    jax.block_until_ready((x2_2, x2_3, x2_4))

    assert x2_2.shape == (B, num_reduction)
    assert x2_3.shape == (B, num_reduction)
    assert x2_4.shape == (B, num_classes)

    # Loose tolerance: the kernel uses bf16 MXU operands, the reference is f32.
    r2_2, r2_3, r2_4 = reference_forward(x, params, num_classes)
    for got, ref in ((x2_2, r2_2), (x2_3, r2_3), (x2_4, r2_4)):
        err = float(jnp.max(jnp.abs(got - ref)))
        assert err < 0.25, f"max abs err {err}"

    # TODO(synk): BatchNorm running_mean/running_var buffer updates (momentum
    # tracking) are not emitted; only the forward normalization is computed.
    print("KERNEL_OK")
</pallas_src>

<mosaic_0001>
module attributes {stable_mosaic.version = 11 : i64} {
  func.func @classifier_kernel(%arg0: i32, %arg1: memref<8x256xbf16, #tpu.memory_space<vmem>>, %arg2: memref<1x256x512xbf16, #tpu.memory_space<vmem>>, %arg3: memref<1x512xf32, #tpu.memory_space<vmem>>, %arg4: memref<8x512xf32, #tpu.memory_space<vmem>>) attributes {dimension_semantics = [#tpu.dimension_semantics<parallel>], iteration_bounds = array<i64: 1>, scalar_prefetch = 0 : i64, scratch_operands = 0 : i64, tpu.core_type = #tpu.core_type<tc>, window_params = [{pipeline_mode = #tpu.pipeline_mode<synchronous>, transform_indices = @transform_0, window_bounds = array<i64: 8, 256>}, {pipeline_mode = #tpu.pipeline_mode<synchronous>, transform_indices = @transform_1, window_bounds = array<i64: 1, 256, 512>}, {pipeline_mode = #tpu.pipeline_mode<synchronous>, transform_indices = @transform_2, window_bounds = array<i64: 1, 512>}, {transform_indices = @transform_3, window_bounds = array<i64: 8, 512>}]} {
    %c512_i32 = arith.constant 512 : i32
    %0 = arith.muli %arg0, %c512_i32 : i32
    %1 = tpu.assume_multiple %0, 128 : i32
    %c0 = arith.constant 0 : index
    %c0_0 = arith.constant 0 : index
    %2 = vector.load %arg1[%c0, %c0_0] : memref<8x256xbf16, #tpu.memory_space<vmem>>, vector<8x256xbf16>
    %c0_1 = arith.constant 0 : index
    %c0_2 = arith.constant 0 : index
    %c0_3 = arith.constant 0 : index
    %3 = vector.load %arg2[%c0_1, %c0_2, %c0_3] : memref<1x256x512xbf16, #tpu.memory_space<vmem>>, vector<1x256x512xbf16>
    %4 = vector.shape_cast %3 : vector<1x256x512xbf16> to vector<256x512xbf16>
    %cst = arith.constant dense<0.000000e+00> : vector<8x512xf32>
    %5 = tpu.matmul %2, %4, %cst {dimension_numbers = #tpu.dot_dimension_numbers<[1], [0], [0], [1], [0, 0, 1, 1], [], []>} : vector<8x256xbf16>, vector<256x512xbf16>, vector<8x512xf32> -> vector<8x512xf32>
    %c0_4 = arith.constant 0 : index
    %6 = arith.index_cast %1 : i32 to index
    %7 = vector.load %arg3[%c0_4, %6] : memref<1x512xf32, #tpu.memory_space<vmem>>, vector<1x512xf32>
    %8 = vector.broadcast %7 : vector<1x512xf32> to vector<8x512xf32>
    %9 = arith.addf %5, %8 : vector<8x512xf32>
    %c0_5 = arith.constant 0 : index
    %c0_6 = arith.constant 0 : index
    %10 = vector.load %arg4[%c0_5, %c0_6] : memref<8x512xf32, #tpu.memory_space<vmem>>, vector<8x512xf32>
    tpu.vector_store %arg4[%c0_5, %c0_6], %9 {strides = array<i32>} : memref<8x512xf32, #tpu.memory_space<vmem>>, vector<8x512xf32>,
    return
  }
  func.func @transform_0(%arg0: i32) -> (i32, i32) {
    %c0_i32 = arith.constant 0 : i32
    %c0_i32_0 = arith.constant 0 : i32
    %c0_i32_1 = arith.constant 0 : i32
    return %c0_i32, %c0_i32_0 : i32, i32
  }
  func.func @transform_1(%arg0: i32) -> (i32, i32, i32) {
    %c0_i32 = arith.constant 0 : i32
    %c0_i32_0 = arith.constant 0 : i32
    %c0_i32_1 = arith.constant 0 : i32
    return %arg0, %c0_i32, %c0_i32_0 : i32, i32, i32
  }
  func.func @transform_2(%arg0: i32) -> (i32, i32) {
    %c0_i32 = arith.constant 0 : i32
    %c0_i32_0 = arith.constant 0 : i32
    %c0_i32_1 = arith.constant 0 : i32
    return %c0_i32, %c0_i32_0 : i32, i32
  }
  func.func @transform_3(%arg0: i32) -> (i32, i32) {
    %c0_i32 = arith.constant 0 : i32
    %c0_i32_0 = arith.constant 0 : i32
    return %c0_i32, %arg0 : i32, i32
  }
}

module attributes {stable_mosaic.version = 11 : i64} {
  func.func @reduce_bn_kernel(%arg0: i32, %arg1: memref<8x64xbf16, #tpu.memory_space<vmem>>, %arg2: memref<64x256xbf16, #tpu.memory_space<vmem>>, %arg3: memref<8x256xf32, #tpu.memory_space<vmem>>, %arg4: memref<8x256xf32, #tpu.memory_space<vmem>>, %arg5: memref<8x256xf32, #tpu.memory_space<vmem>>, %arg6: memref<8x256xbf16, #tpu.memory_space<vmem>>) attributes {dimension_semantics = [#tpu.dimension_semantics<arbitrary>], iteration_bounds = array<i64: 1>, scalar_prefetch = 0 : i64, scratch_operands = 0 : i64, tpu.core_type = #tpu.core_type<tc>, window_params = [{pipeline_mode = #tpu.pipeline_mode<synchronous>, transform_indices = @transform_0, window_bounds = array<i64: 8, 64>}, {pipeline_mode = #tpu.pipeline_mode<synchronous>, transform_indices = @transform_1, window_bounds = array<i64: 64, 256>}, {pipeline_mode = #tpu.pipeline_mode<synchronous>, transform_indices = @transform_2, window_bounds = array<i64: 8, 256>}, {pipeline_mode = #tpu.pipeline_mode<synchronous>, transform_indices = @transform_3, window_bounds = array<i64: 8, 256>}, {pipeline_mode = #tpu.pipeline_mode<synchronous>, transform_indices = @transform_4, window_bounds = array<i64: 8, 256>}, {pipeline_mode = #tpu.pipeline_mode<synchronous>, transform_indices = @transform_5, window_bounds = array<i64: 8, 256>}]} {
    %0 = tpu.iota {dimensions = array<i32: 0>} : vector<8x1xi32>
    %c6_i32 = arith.constant 6 : i32
    %1 = vector.broadcast %c6_i32 : i32 to vector<8x1xi32>
    %2 = arith.cmpi slt, %0, %1 : vector<8x1xi32>
    %3 = arith.extui %2 : vector<8x1xi1> to vector<8x1xi32>
    %4 = arith.sitofp %3 : vector<8x1xi32> to vector<8x1xf32>
    %c0 = arith.constant 0 : index
    %c0_0 = arith.constant 0 : index
    %5 = vector.load %arg1[%c0, %c0_0] : memref<8x64xbf16, #tpu.memory_space<vmem>>, vector<8x64xbf16>
    %c0_1 = arith.constant 0 : index
    %c0_2 = arith.constant 0 : index
    %6 = vector.load %arg2[%c0_1, %c0_2] : memref<64x256xbf16, #tpu.memory_space<vmem>>, vector<64x256xbf16>
    %cst = arith.constant dense<0.000000e+00> : vector<8x256xf32>
    %7 = tpu.matmul %5, %6, %cst {dimension_numbers = #tpu.dot_dimension_numbers<[1], [0], [0], [1], [0, 0, 1, 1], [], []>} : vector<8x64xbf16>, vector<64x256xbf16>, vector<8x256xf32> -> vector<8x256xf32>
    %cst_3 = arith.constant dense<0.000000e+00> : vector<256xf32>
    %8 = vector.multi_reduction <add>, %7, %cst_3 [0] : vector<8x256xf32> to vector<256xf32>
    %9 = vector.shape_cast %8 : vector<256xf32> to vector<1x256xf32>
    %cst_4 = arith.constant 0.166666672 : f32
    %10 = vector.broadcast %cst_4 : f32 to vector<1x256xf32>
    %11 = arith.mulf %9, %10 : vector<1x256xf32>
    %12 = vector.broadcast %11 : vector<1x256xf32> to vector<8x256xf32>
    %13 = arith.subf %7, %12 : vector<8x256xf32>
    %14 = vector.broadcast %4 : vector<8x1xf32> to vector<8x256xf32>
    %15 = arith.mulf %13, %14 : vector<8x256xf32>
    %16 = arith.mulf %15, %15 : vector<8x256xf32>
    %cst_5 = arith.constant dense<0.000000e+00> : vector<256xf32>
    %17 = vector.multi_reduction <add>, %16, %cst_5 [0] : vector<8x256xf32> to vector<256xf32>
    %18 = vector.shape_cast %17 : vector<256xf32> to vector<1x256xf32>
    %cst_6 = arith.constant 0.166666672 : f32
    %19 = vector.broadcast %cst_6 : f32 to vector<1x256xf32>
    %20 = arith.mulf %18, %19 : vector<1x256xf32>
    %c0_7 = arith.constant 0 : index
    %c0_8 = arith.constant 0 : index
    %21 = vector.load %arg3[%c0_7, %c0_8] : memref<8x256xf32, #tpu.memory_space<vmem>>, vector<1x256xf32>
    %cst_9 = arith.constant 9.99999974E-6 : f32
    %22 = vector.broadcast %cst_9 : f32 to vector<1x256xf32>
    %23 = arith.addf %20, %22 : vector<1x256xf32>
    %24 = math.rsqrt %23 : vector<1x256xf32>
    %25 = arith.mulf %21, %24 : vector<1x256xf32>
    %c1 = arith.constant 1 : index
    %c0_10 = arith.constant 0 : index
    %26 = vector.load %arg3[%c1, %c0_10] : memref<8x256xf32, #tpu.memory_space<vmem>>, vector<1x256xf32>
    %27 = arith.mulf %11, %25 : vector<1x256xf32>
    %28 = arith.subf %26, %27 : vector<1x256xf32>
    %29 = vector.broadcast %25 : vector<1x256xf32> to vector<8x256xf32>
    %30 = arith.mulf %7, %29 : vector<8x256xf32>
    %31 = vector.broadcast %28 : vector<1x256xf32> to vector<8x256xf32>
    %32 = arith.addf %30, %31 : vector<8x256xf32>
    %cst_11 = arith.constant 0.000000e+00 : f32
    %33 = vector.broadcast %cst_11 : f32 to vector<8x256xf32>
    %34 = arith.cmpf ogt, %32, %33 : vector<8x256xf32>
    %cst_12 = arith.constant 1.000000e-01 : f32
    %35 = vector.broadcast %cst_12 : f32 to vector<8x256xf32>
    %36 = arith.mulf %35, %32 : vector<8x256xf32>
    %37 = arith.select %34, %32, %36 : vector<8x256xi1>, vector<8x256xf32>
    %38 = vector.broadcast %4 : vector<8x1xf32> to vector<8x256xf32>
    %39 = arith.mulf %37, %38 : vector<8x256xf32>
    %c0_13 = arith.constant 0 : index
    %c0_14 = arith.constant 0 : index
    %40 = vector.load %arg4[%c0_13, %c0_14] : memref<8x256xf32, #tpu.memory_space<vmem>>, vector<8x256xf32>
    tpu.vector_store %arg4[%c0_13, %c0_14], %39 {strides = array<i32>} : memref<8x256xf32, #tpu.memory_space<vmem>>, vector<8x256xf32>,
    %cst_15 = arith.constant dense<0.000000e+00> : vector<256xf32>
    %41 = vector.multi_reduction <add>, %39, %cst_15 [0] : vector<8x256xf32> to vector<256xf32>
    %42 = vector.shape_cast %41 : vector<256xf32> to vector<1x256xf32>
    %cst_16 = arith.constant 0.166666672 : f32
    %43 = vector.broadcast %cst_16 : f32 to vector<1x256xf32>
    %44 = arith.mulf %42, %43 : vector<1x256xf32>
    %45 = vector.broadcast %44 : vector<1x256xf32> to vector<8x256xf32>
    %46 = arith.subf %39, %45 : vector<8x256xf32>
    %47 = vector.broadcast %4 : vector<8x1xf32> to vector<8x256xf32>
    %48 = arith.mulf %46, %47 : vector<8x256xf32>
    %49 = arith.mulf %48, %48 : vector<8x256xf32>
    %cst_17 = arith.constant dense<0.000000e+00> : vector<256xf32>
    %50 = vector.multi_reduction <add>, %49, %cst_17 [0] : vector<8x256xf32> to vector<256xf32>
    %51 = vector.shape_cast %50 : vector<256xf32> to vector<1x256xf32>
    %cst_18 = arith.constant 0.166666672 : f32
    %52 = vector.broadcast %cst_18 : f32 to vector<1x256xf32>
    %53 = arith.mulf %51, %52 : vector<1x256xf32>
    %c2 = arith.constant 2 : index
    %c0_19 = arith.constant 0 : index
    %54 = vector.load %arg3[%c2, %c0_19] : memref<8x256xf32, #tpu.memory_space<vmem>>, vector<1x256xf32>
    %cst_20 = arith.constant 9.99999974E-6 : f32
    %55 = vector.broadcast %cst_20 : f32 to vector<1x256xf32>
    %56 = arith.addf %53, %55 : vector<1x256xf32>
    %57 = math.rsqrt %56 : vector<1x256xf32>
    %58 = arith.mulf %54, %57 : vector<1x256xf32>
    %c3 = arith.constant 3 : index
    %c0_21 = arith.constant 0 : index
    %59 = vector.load %arg3[%c3, %c0_21] : memref<8x256xf32, #tpu.memory_space<vmem>>, vector<1x256xf32>
    %60 = arith.mulf %44, %58 : vector<1x256xf32>
    %61 = arith.subf %59, %60 : vector<1x256xf32>
    %62 = vector.broadcast %58 : vector<1x256xf32> to vector<8x256xf32>
    %63 = arith.mulf %39, %62 : vector<8x256xf32>
    %64 = vector.broadcast %61 : vector<1x256xf32> to vector<8x256xf32>
    %65 = arith.addf %63, %64 : vector<8x256xf32>
    %66 = vector.broadcast %4 : vector<8x1xf32> to vector<8x256xf32>
    %67 = arith.mulf %65, %66 : vector<8x256xf32>
    %c0_22 = arith.constant 0 : index
    %c0_23 = arith.constant 0 : index
    %68 = vector.load %arg5[%c0_22, %c0_23] : memref<8x256xf32, #tpu.memory_space<vmem>>, vector<8x256xf32>
    tpu.vector_store %arg5[%c0_22, %c0_23], %67 {strides = array<i32>} : memref<8x256xf32, #tpu.memory_space<vmem>>, vector<8x256xf32>,
    %69 = arith.truncf %67 : vector<8x256xf32> to vector<8x256xbf16>
    %c0_24 = arith.constant 0 : index
    %c0_25 = arith.constant 0 : index
    %70 = vector.load %arg6[%c0_24, %c0_25] : memref<8x256xbf16, #tpu.memory_space<vmem>>, vector<8x256xbf16>
    tpu.vector_store %arg6[%c0_24, %c0_25], %69 {strides = array<i32>} : memref<8x256xbf16, #tpu.memory_space<vmem>>, vector<8x256xbf16>,
    return
  }
  func.func @transform_0(%arg0: i32) -> (i32, i32) {
    %c0_i32 = arith.constant 0 : i32
    %c0_i32_0 = arith.constant 0 : i32
    %c0_i32_1 = arith.constant 0 : i32
    return %c0_i32, %c0_i32_0 : i32, i32
  }
  func.func @transform_1(%arg0: i32) -> (i32, i32) {
    %c0_i32 = arith.constant 0 : i32
    %c0_i32_0 = arith.constant 0 : i32
    %c0_i32_1 = arith.constant 0 : i32
    return %c0_i32, %c0_i32_0 : i32, i32
  }
  func.func @transform_2(%arg0: i32) -> (i32, i32) {
    %c0_i32 = arith.constant 0 : i32
    %c0_i32_0 = arith.constant 0 : i32
    %c0_i32_1 = arith.constant 0 : i32
    return %c0_i32, %c0_i32_0 : i32, i32
  }
  func.func @transform_3(%arg0: i32) -> (i32, i32) {
    %c0_i32 = arith.constant 0 : i32
    %c0_i32_0 = arith.constant 0 : i32
    %c0_i32_1 = arith.constant 0 : i32
    return %c0_i32, %c0_i32_0 : i32, i32
  }
  func.func @transform_4(%arg0: i32) -> (i32, i32) {
    %c0_i32 = arith.constant 0 : i32
    %c0_i32_0 = arith.constant 0 : i32
    %c0_i32_1 = arith.constant 0 : i32
    return %c0_i32, %c0_i32_0 : i32, i32
  }
  func.func @transform_5(%arg0: i32) -> (i32, i32) {
    %c0_i32 = arith.constant 0 : i32
    %c0_i32_0 = arith.constant 0 : i32
    %c0_i32_1 = arith.constant 0 : i32
    return %c0_i32, %c0_i32_0 : i32, i32
  }
}

</mosaic_0001>

<llo_original>
// kernel: conv_bn_forward.2
$region0: #{conv_bn_forward.2}
  #allocation0 [shape = 'u32[]', space=smem, size = 0x4, offset = 0x4, fixed_abs, tag = 'smem constant byte address 0x4 - core index']
  #allocation1 [shape = 'u32[144,128]{1,0:T(1,128)}', space=vmem, size = 0x12000, scoped, tag = 'internal scratch']
  %s0 = inlined_call_operand.vmem [shape: bf16[8,64], index: 0, kind: input, shape index: {}]
  %s1 = inlined_call_operand.hbm [shape: bf16[64,256], index: 1, kind: input, shape index: {}]
  %s2 = inlined_call_operand.vmem [shape: f32[8,256], index: 2, kind: input, shape index: {}]
  %s3 = inlined_call_operand.hbm [shape: f32[8,256], index: 3, kind: output, shape index: {0}]
  %s4 = inlined_call_operand.hbm [shape: f32[8,256], index: 4, kind: output, shape index: {1}]
  %s5 = inlined_call_operand.vmem [shape: bf16[8,256], index: 5, kind: output, shape index: {2}]
  %6 = xla_tuple %s3, %s4, %s5
  %s7 = sld [smem:[#allocation0]]
  $region42: #{conv_bn_forward.2} parent=0
    _
  %s9 = ssub.s32 1, %s7
  %s10 = scalar_select 0, %s9, %s7
  $region1: #{conv_bn_forward.2} parent=0
    #allocation2 [shape = 'u8[32768]{0}', space=vmem, size = 0x8000, scoped, tag = 'input window, operand 1, single buffered']
    #allocation3 [shape = 's32[1]{0}', space=sflag, size = 0x4, scoped, tag = 'scoped memory for conv_bn_forward.2']
    #allocation4 [shape = 's32[1]{0}', space=sflag, size = 0x4, scoped, tag = 'scoped memory for conv_bn_forward.2']
    #allocation5 [shape = 'u8[8192]{0}', space=vmem, size = 0x2000, scoped, tag = 'output window, operand 0, single buffered']
    #allocation6 [shape = 'u8[8192]{0}', space=vmem, size = 0x2000, scoped, tag = 'output window, operand 1, single buffered']
    #allocation7 [shape = 's32[1]{0}', space=sflag, size = 0x4, scoped, tag = 'scoped memory for conv_bn_forward.2']
    %11 = vsyncpa [#allocation3], 0
    %12 = vsyncpa [#allocation4], 0
    %13 = vsyncpa [#allocation7], 0
    // Predicated region
    $region2: #{conv_bn_forward.2} parent=1 // pred_check
      _
    $region3: #{conv_bn_forward.2} parent=1 // pred_check_branch
      %15 = sbr.rel (0) target = $region5
    $region4: #{conv_bn_forward.2} parent=1 // pred_region
      _
    $region5: #{conv_bn_forward.2} parent=1 // pred_fallthru
      _
    // Predicated region
    $region6: #{conv_bn_forward.2} parent=1 // pred_check
      _
    $region7: #{conv_bn_forward.2} parent=1 // pred_check_branch
      %17 = sbr.rel (0) target = $region9
    $region8: #{conv_bn_forward.2} parent=1 // pred_region
      %s19 = ssub.s32 1024, 1024
      %20 = vsyncadd [#allocation3], %s19
      %s21 = sshll.u32 [#allocation2], 4
      %s22 = int_to_ptr.vmem [resolvable:$true] %s21
      %27 = dma.hbm_to_vmem [thread:$0]  %s1, 1024, %s22, [#allocation3], 128, 128, 8
    $region9: #{conv_bn_forward.2} parent=1 // pred_fallthru
      _
    // Predicated region
    $region10: #{conv_bn_forward.2} parent=1 // pred_check
      _
    $region11: #{conv_bn_forward.2} parent=1 // pred_check_branch
      %29 = sbr.rel (0) target = $region13
    $region12: #{conv_bn_forward.2} parent=1 // pred_region
      _
    $region13: #{conv_bn_forward.2} parent=1 // pred_fallthru
      _
    // Predicated region
    $region14: #{conv_bn_forward.2} parent=1 // pred_check
      _
    $region15: #{conv_bn_forward.2} parent=1 // pred_check_branch
      %31 = sbr.rel (0) target = $region17
    $region16: #{conv_bn_forward.2} parent=1 // pred_region
      %32 = dma.done [#allocation3], 1024
    $region17: #{conv_bn_forward.2} parent=1 // pred_fallthru
      _
    %v34 = vlaneseq
    %v35 = vshrl.u32 %v34, 7
    %vm36 = vcmp.lt.s32.totalorder %v35, 6
    %v37 = vsel %vm36, 1, 0
    %v38 = vcvt.s32.f32 %v37
    %v39 = vld [vmem:[%s0] sm:$0xf]
    %v40 = vld [vmem:[#allocation2] sm:$0xff]
    %v41 = vld [vmem:[#allocation2 + $0x8] sm:$0xff]
    %v42 = vld [vmem:[#allocation2 + $0x10] sm:$0xff]
    %v43 = vld [vmem:[#allocation2 + $0x18] sm:$0xff]
    %v44 = vld [vmem:[#allocation2 + $0x20] sm:$0xff]
    %v45 = vld [vmem:[#allocation2 + $0x28] sm:$0xff]
    %v46 = vld [vmem:[#allocation2 + $0x30] sm:$0xff]
    %v47 = vld [vmem:[#allocation2 + $0x38] sm:$0xff]
    %v56 = vunpack.c.l.b16 %v40
    %v57 = vunpack.c.h.b16 %v40
    %v58 = vunpack.c.l.b16 %v41
    %v59 = vunpack.c.h.b16 %v41
    %v60 = vunpack.c.l.b16 %v42
    %v61 = vunpack.c.h.b16 %v42
    %v62 = vunpack.c.l.b16 %v43
    %v63 = vunpack.c.h.b16 %v43
    %v64 = vunpack.c.l.b16 %v44
    %v65 = vunpack.c.h.b16 %v44
    %v66 = vunpack.c.l.b16 %v45
    %v67 = vunpack.c.h.b16 %v45
    %v68 = vunpack.c.l.b16 %v46
    %v69 = vunpack.c.h.b16 %v46
    %v70 = vunpack.c.l.b16 %v47
    %v71 = vunpack.c.h.b16 %v47
    %v72 = vpack.c.b16 %v58, %v56
    %v73 = vpack.c.b16 %v59, %v57
    %v74 = vpack.c.b16 %v62, %v60
    %v75 = vpack.c.b16 %v63, %v61
    %v76 = vpack.c.b16 %v66, %v64
    %v77 = vpack.c.b16 %v67, %v65
    %v78 = vpack.c.b16 %v70, %v68
    %v79 = vpack.c.b16 %v71, %v69
    %vm88 = vcmask 523264
    %v90 = vsel %vm88, %v39, 0
    %92 = vmatprep.subr.bf16.mxu0 %v73
    %93 = vmatpush1.bf16.msra.mxu0 %v72
    %94 = vmatprep.subr.bf16.mxu0 %v75
    %95 = vmatpush1.bf16.msra.mxu0 %v74
    %96 = vmatprep.subr.bf16.mxu0 %v77
    %97 = vmatpush1.bf16.msra.mxu0 %v76
    %98 = vmatprep.subr.bf16.mxu0 %v79
    %99 = vmatpush1.bf16.msra.mxu0 %v78
    %100 = vmatprep.subr.bf16.mxu0 0
    %101 = vmatpush1.bf16.msra.mxu0 0
    %102 = vmatprep.subr.bf16.mxu0 0
    %103 = vmatpush1.bf16.msra.mxu0 0
    %104 = vmatprep.subr.bf16.mxu0 0
    %105 = vmatpush1.bf16.msra.mxu0 0
    %106 = vmatprep.subr.bf16.mxu0 0
    %107 = vmatpush1.bf16.msra.mxu0 0
    %108 = vmatprep.subr.bf16.mxu0 0
    %109 = vmatpush1.bf16.msra.mxu0 0
    %110 = vmatprep.subr.bf16.mxu0 0
    %111 = vmatpush1.bf16.msra.mxu0 0
    %112 = vmatprep.subr.bf16.mxu0 0
    %113 = vmatpush1.bf16.msra.mxu0 0
    %114 = vmatprep.subr.bf16.mxu0 0
    %115 = vmatpush1.bf16.msra.mxu0 0
    %116 = vmatprep.subr.bf16.mxu0 0
    %117 = vmatpush1.bf16.msra.mxu0 0
    %118 = vmatprep.subr.bf16.mxu0 0
    %119 = vmatpush1.bf16.msra.mxu0 0
    %120 = vmatprep.subr.bf16.mxu0 0
    %121 = vmatpush1.bf16.msra.mxu0 0
    %122 = vmatprep.subr.bf16.mxu0 0
    %123 = vmatpush1.bf16.msra.mxu0 0
    %124 = vmatprep.mubr.bf16.mxu0 0
    %125 = vmatmul.mubr.bf16.gmra.mrb[0].mxu0 %v90
    %v126 = vpop.f32.mrb[0].mxu0
    %v127 = vadd.f32 0.0, %v126
    %v128 = vpop.f32.mrb[0].mxu0
    %v129 = vadd.f32 0.0, %v128
    %v130 = vpop.f32.mrb[0].mxu0
    %v131 = vpop.f32.mrb[0].mxu0
    %132 = vdwg.mxu0
    %v133 = vrot.slane %v127, 4
    %v134 = vadd.f32 %v127, %v133
    %v135 = vrot.slane %v134, 2
    %v136 = vadd.f32 %v134, %v135
    %v137 = vrot.slane %v136, 1
    %v138 = vadd.f32 %v136, %v137
    %v139 = vrot.slane %v129, 4
    %v140 = vadd.f32 %v129, %v139
    %v141 = vrot.slane %v140, 2
    %v142 = vadd.f32 %v140, %v141
    %v143 = vrot.slane %v142, 1
    %v144 = vadd.f32 %v142, %v143
    %v145 = vmul.f32 %v138, 0.16666667
    %v146 = vmul.f32 %v144, 0.16666667
    %v147 = vsub.f32 %v127, %v145
    %v148 = vsub.f32 %v129, %v146
    %v149 = vmul.f32 %v147, %v38
    %v150 = vmul.f32 %v148, %v38
    %v151 = vmul.f32 %v149, %v149
    %v152 = vmul.f32 %v150, %v150
    %v153 = vrot.slane %v151, 4
    %v154 = vadd.f32 %v151, %v153
    %v155 = vrot.slane %v154, 2
    %v156 = vadd.f32 %v154, %v155
    %v157 = vrot.slane %v156, 1
    %v158 = vadd.f32 %v156, %v157
    %v159 = vrot.slane %v152, 4
    %v160 = vadd.f32 %v152, %v159
    %v161 = vrot.slane %v160, 2
    %v162 = vadd.f32 %v160, %v161
    %v163 = vrot.slane %v162, 1
    %v164 = vadd.f32 %v162, %v163
    %v165 = vmul.f32 %v158, 0.16666667
    %v166 = vmul.f32 %v164, 0.16666667
    %v167 = vld [vmem:[%s2] ss:$8 sm:$0x3]
    %v168 = vadd.f32 %v165, 1e-05
    %v169 = vadd.f32 %v166, 1e-05
    %v170 = vrsqrt.pop %v168
    %v171 = vrsqrt.pop %v169
    %v174 = vcombine.low %v170, %v171
    %v176 = vunpack.c.l.s4 1966171168
    %v177 = vunpack.c.0.s8 %v176
    %v178 = vlaneseq
    %v179 = vshrl.u32 %v178, 7
    %v180 = vsub.s32 %v177, %v179
    %v181 = vrot.slane %v174, %v180
    %v183 = vunpack.c.l.s4 1966171168
    %v184 = vunpack.c.0.s8 %v183
    %v185 = vlaneseq
    %v186 = vshrl.u32 %v185, 7
    %v187 = vsub.s32 %v184, %v186
    %v188 = vrot.slane %v181, %v187
    %v190 = vmul.f32 %v167, %v188
    %s191 = scalar_lea.vmem %s2, 1
    %v192 = vld [vmem:[%s191] ss:$8 sm:$0x3]
    %v194 = vlaneseq
    %v195 = vshrl.u32 %v194, 7
    %v196 = vsub.s32 0, %v195
    %v197 = vrot.slane %v190, %v196
    %v198 = vlaneseq
    %v199 = vshrl.u32 %v198, 7
    %v200 = vsub.s32 1, %v199
    %v201 = vrot.slane %v190, %v200
    %v204 = vmul.f32 %v145, %v197
    %v205 = vmul.f32 %v146, %v201
    %v208 = vcombine.low %v204, %v205
    %v210 = vunpack.c.l.s4 1966171168
    %v211 = vunpack.c.0.s8 %v210
    %v212 = vlaneseq
    %v213 = vshrl.u32 %v212, 7
    %v214 = vsub.s32 %v211, %v213
    %v215 = vrot.slane %v208, %v214
    %v217 = vunpack.c.l.s4 1966171168
    %v218 = vunpack.c.0.s8 %v217
    %v219 = vlaneseq
    %v220 = vshrl.u32 %v219, 7
    %v221 = vsub.s32 %v218, %v220
    %v222 = vrot.slane %v215, %v221
    %v224 = vsub.f32 %v192, %v222
    %v225 = vmul.f32 %v127, %v197
    %v226 = vmul.f32 %v129, %v201
    %v228 = vlaneseq
    %v229 = vshrl.u32 %v228, 7
    %v230 = vsub.s32 0, %v229
    %v231 = vrot.slane %v224, %v230
    %v232 = vlaneseq
    %v233 = vshrl.u32 %v232, 7
    %v234 = vsub.s32 1, %v233
    %v235 = vrot.slane %v224, %v234
    %v238 = vadd.f32 %v225, %v231
    %v239 = vadd.f32 %v226, %v235
    %vm240 = vcmp.gt.f32.partialorder %v238, 0.0
    %vm241 = vcmp.gt.f32.partialorder %v239, 0.0
    %v242 = vmul.f32 %v238, 0.1
    %v243 = vmul.f32 %v239, 0.1
    %v244 = vsel %vm240, %v238, %v242
    %v245 = vsel %vm241, %v239, %v243
    %v246 = vmul.f32 %v244, %v38
    %v247 = vmul.f32 %v245, %v38
    %248 = vst [vmem:[#allocation5] sm:$0xff] %v246
    %249 = vst [vmem:[#allocation5 + $0x8] sm:$0xff] %v247
    %v250 = vrot.slane %v246, 4
    %v251 = vadd.f32 %v246, %v250
    %v252 = vrot.slane %v251, 2
    %v253 = vadd.f32 %v251, %v252
    %v254 = vrot.slane %v253, 1
    %v255 = vadd.f32 %v253, %v254
    %v256 = vrot.slane %v247, 4
    %v257 = vadd.f32 %v247, %v256
    %v258 = vrot.slane %v257, 2
    %v259 = vadd.f32 %v257, %v258
    %v260 = vrot.slane %v259, 1
    %v261 = vadd.f32 %v259, %v260
    %v262 = vmul.f32 %v255, 0.16666667
    %v263 = vmul.f32 %v261, 0.16666667
    %v264 = vsub.f32 %v246, %v262
    %v265 = vsub.f32 %v247, %v263
    %v266 = vmul.f32 %v264, %v38
    %v267 = vmul.f32 %v265, %v38
    %v268 = vmul.f32 %v266, %v266
    %v269 = vmul.f32 %v267, %v267
    %v270 = vrot.slane %v268, 4
    %v271 = vadd.f32 %v268, %v270
    %v272 = vrot.slane %v271, 2
    %v273 = vadd.f32 %v271, %v272
    %v274 = vrot.slane %v273, 1
    %v275 = vadd.f32 %v273, %v274
    %v276 = vrot.slane %v269, 4
    %v277 = vadd.f32 %v269, %v276
    %v278 = vrot.slane %v277, 2
    %v279 = vadd.f32 %v277, %v278
    %v280 = vrot.slane %v279, 1
    %v281 = vadd.f32 %v279, %v280
    %v282 = vmul.f32 %v275, 0.16666667
    %v283 = vmul.f32 %v281, 0.16666667
    %s284 = scalar_lea.vmem %s2, 2
    %v285 = vld [vmem:[%s284] ss:$8 sm:$0x3]
    %v286 = vadd.f32 %v282, 1e-05
    %v287 = vadd.f32 %v283, 1e-05
    %v288 = vrsqrt.pop %v286
    %v289 = vrsqrt.pop %v287
    %v292 = vcombine.low %v288, %v289
    %v294 = vunpack.c.l.s4 1966171168
    %v295 = vunpack.c.0.s8 %v294
    %v296 = vlaneseq
    %v297 = vshrl.u32 %v296, 7
    %v298 = vsub.s32 %v295, %v297
    %v299 = vrot.slane %v292, %v298
    %v301 = vunpack.c.l.s4 1966171168
    %v302 = vunpack.c.0.s8 %v301
    %v303 = vlaneseq
    %v304 = vshrl.u32 %v303, 7
    %v305 = vsub.s32 %v302, %v304
    %v306 = vrot.slane %v299, %v305
    %v308 = vmul.f32 %v285, %v306
    %s309 = scalar_lea.vmem %s2, 3
    %v310 = vld [vmem:[%s309] ss:$8 sm:$0x3]
    %v312 = vlaneseq
    %v313 = vshrl.u32 %v312, 7
    %v314 = vsub.s32 0, %v313
    %v315 = vrot.slane %v308, %v314
    %v316 = vlaneseq
    %v317 = vshrl.u32 %v316, 7
    %v318 = vsub.s32 1, %v317
    %v319 = vrot.slane %v308, %v318
    %v322 = vmul.f32 %v262, %v315
    %v323 = vmul.f32 %v263, %v319
    %v326 = vcombine.low %v322, %v323
    %v328 = vunpack.c.l.s4 1966171168
    %v329 = vunpack.c.0.s8 %v328
    %v330 = vlaneseq
    %v331 = vshrl.u32 %v330, 7
    %v332 = vsub.s32 %v329, %v331
    %v333 = vrot.slane %v326, %v332
    %v335 = vunpack.c.l.s4 1966171168
    %v336 = vunpack.c.0.s8 %v335
    %v337 = vlaneseq
    %v338 = vshrl.u32 %v337, 7
    %v339 = vsub.s32 %v336, %v338
    %v340 = vrot.slane %v333, %v339
    %v342 = vsub.f32 %v310, %v340
    %v343 = vmul.f32 %v246, %v315
    %v344 = vmul.f32 %v247, %v319
    %v346 = vlaneseq
    %v347 = vshrl.u32 %v346, 7
    %v348 = vsub.s32 0, %v347
    %v349 = vrot.slane %v342, %v348
    %v350 = vlaneseq
    %v351 = vshrl.u32 %v350, 7
    %v352 = vsub.s32 1, %v351
    %v353 = vrot.slane %v342, %v352
    %v356 = vadd.f32 %v343, %v349
    %v357 = vadd.f32 %v344, %v353
    %v358 = vmul.f32 %v356, %v38
    %v359 = vmul.f32 %v357, %v38
    %360 = vst [vmem:[#allocation6] sm:$0xff] %v358
    %361 = vst [vmem:[#allocation6 + $0x8] sm:$0xff] %v359
    %v362 = vpack.c.bf16 %v358, %v358
    %v363 = vpack.c.bf16 %v359, %v359
    %v366 = vunpack.c.l.b16 %v362
    %v367 = vunpack.c.l.b16 %v363
    %v368 = vpack.c.b16 %v367, %v366
    %370 = vst [vmem:[%s5] sm:$0xff] %v368
    // Predicated region
    $region18: #{conv_bn_forward.2} parent=1 // pred_check
      _
    $region19: #{conv_bn_forward.2} parent=1 // pred_check_branch
      %372 = sbr.rel (0) target = $region21
    $region20: #{conv_bn_forward.2} parent=1 // pred_region
      %s374 = ssub.s32 256, 256
      %375 = vsyncadd [#allocation4], %s374
      %s377 = sshll.u32 [#allocation5], 4
      %s378 = int_to_ptr.vmem [resolvable:$true] %s377
      %380 = dma.vmem_to_hbm [thread:$0]  %s378, 256, %s3, [#allocation4]
    $region21: #{conv_bn_forward.2} parent=1 // pred_fallthru
      _
    // Predicated region
    $region22: #{conv_bn_forward.2} parent=1 // pred_check
      _
    $region23: #{conv_bn_forward.2} parent=1 // pred_check_branch
      %382 = sbr.rel (0) target = $region25
    $region24: #{conv_bn_forward.2} parent=1 // pred_region
      %s384 = ssub.s32 256, 256
      %385 = vsyncadd [#allocation7], %s384
      %s387 = sshll.u32 [#allocation6], 4
      %s388 = int_to_ptr.vmem [resolvable:$true] %s387
      %390 = dma.vmem_to_hbm [thread:$0]  %s388, 256, %s4, [#allocation7]
    $region25: #{conv_bn_forward.2} parent=1 // pred_fallthru
      _
    // Predicated region
    $region26: #{conv_bn_forward.2} parent=1 // pred_check
      _
    $region27: #{conv_bn_forward.2} parent=1 // pred_check_branch
      %392 = sbr.rel (0) target = $region29
    $region28: #{conv_bn_forward.2} parent=1 // pred_region
      _
    $region29: #{conv_bn_forward.2} parent=1 // pred_fallthru
      _
    // Predicated region
    $region30: #{conv_bn_forward.2} parent=1 // pred_check
      _
    $region31: #{conv_bn_forward.2} parent=1 // pred_check_branch
      %394 = sbr.rel (0) target = $region33
    $region32: #{conv_bn_forward.2} parent=1 // pred_region
      %395 = dma.done [#allocation4], 256
    $region33: #{conv_bn_forward.2} parent=1 // pred_fallthru
      _
    // Predicated region
    $region34: #{conv_bn_forward.2} parent=1 // pred_check
      _
    $region35: #{conv_bn_forward.2} parent=1 // pred_check_branch
      %397 = sbr.rel (0) target = $region37
    $region36: #{conv_bn_forward.2} parent=1 // pred_region
      %398 = dma.done [#allocation7], 256
    $region37: #{conv_bn_forward.2} parent=1 // pred_fallthru
      _
    // Predicated region
    $region38: #{conv_bn_forward.2} parent=1 // pred_check
      _
    $region39: #{conv_bn_forward.2} parent=1 // pred_check_branch
      %400 = sbr.rel (0) target = $region41
    $region40: #{conv_bn_forward.2} parent=1 // pred_region
      _
    $region41: #{conv_bn_forward.2} parent=1 // pred_fallthru
      _
    %401 = vsyncpa [#allocation3], 1
    %402 = vsyncpa [#allocation4], 1
    %403 = vsyncpa [#allocation7], 1

// kernel: conv_bn_forward.3
$region0: #{conv_bn_forward.3}
  #allocation0 [shape = 'u32[]', space=smem, size = 0x4, offset = 0x4, fixed_abs, tag = 'smem constant byte address 0x4 - core index']
  #allocation1 [shape = 'u32[144,128]{1,0:T(1,128)}', space=vmem, size = 0x12000, scoped, tag = 'internal scratch']
  %s0 = inlined_call_operand.vmem [shape: bf16[8,256], index: 0, kind: input, shape index: {}]
  %s1 = inlined_call_operand.hbm [shape: bf16[1,256,512], index: 1, kind: input, shape index: {}]
  %s2 = inlined_call_operand.vmem [shape: f32[1,512], index: 2, kind: input, shape index: {}]
  %s3 = inlined_call_operand.vmem [shape: f32[8,512], index: 3, kind: output, shape index: {}]
  %s4 = sld [smem:[#allocation0]]
  $region26: #{conv_bn_forward.3} parent=0
    _
  %s6 = ssub.s32 1, %s4
  %s7 = scalar_select 0, %s6, %s4
  $region1: #{conv_bn_forward.3} parent=0
    #allocation2 [shape = 'u8[262144]{0}', space=vmem, size = 0x40000, scoped, tag = 'input window, operand 1, single buffered']
    #allocation3 [shape = 's32[1]{0}', space=sflag, size = 0x4, scoped, tag = 'scoped memory for conv_bn_forward.3']
    %8 = vsyncpa [#allocation3], 0
    // Predicated region
    $region2: #{conv_bn_forward.3} parent=1 // pred_check
      _
    $region3: #{conv_bn_forward.3} parent=1 // pred_check_branch
      %10 = sbr.rel (0) target = $region5
    $region4: #{conv_bn_forward.3} parent=1 // pred_region
      _
    $region5: #{conv_bn_forward.3} parent=1 // pred_fallthru
      _
    // Predicated region
    $region6: #{conv_bn_forward.3} parent=1 // pred_check
      _
    $region7: #{conv_bn_forward.3} parent=1 // pred_check_branch
      %12 = sbr.rel (0) target = $region9
    $region8: #{conv_bn_forward.3} parent=1 // pred_region
      %s14 = ssub.s32 8192, 8192
      %15 = vsyncadd [#allocation3], %s14
      %s16 = sshll.u32 [#allocation2], 4
      %s17 = int_to_ptr.vmem [resolvable:$true] %s16
      %22 = dma.hbm_to_vmem [thread:$0]  %s1, 8192, %s17, [#allocation3], 256, 256, 16
    $region9: #{conv_bn_forward.3} parent=1 // pred_fallthru
      _
    // Predicated region
    $region10: #{conv_bn_forward.3} parent=1 // pred_check
      _
    $region11: #{conv_bn_forward.3} parent=1 // pred_check_branch
      %24 = sbr.rel (0) target = $region13
    $region12: #{conv_bn_forward.3} parent=1 // pred_region
      _
    $region13: #{conv_bn_forward.3} parent=1 // pred_fallthru
      _
    // Predicated region
    $region14: #{conv_bn_forward.3} parent=1 // pred_check
      _
    $region15: #{conv_bn_forward.3} parent=1 // pred_check_branch
      %26 = sbr.rel (0) target = $region17
    $region16: #{conv_bn_forward.3} parent=1 // pred_region
      %27 = dma.done [#allocation3], 8192
    $region17: #{conv_bn_forward.3} parent=1 // pred_fallthru
      _
    %s28 = smul.u32 0, 512
    %v29 = vld [vmem:[%s0] sm:$0xff]
    %v30 = vld [vmem:[#allocation2] sm:$0xff]
    %v31 = vld [vmem:[#allocation2 + $0x8] sm:$0xff]
    %v32 = vld [vmem:[#allocation2 + $0x10] sm:$0xff]
    %v33 = vld [vmem:[#allocation2 + $0x18] sm:$0xff]
    %v34 = vld [vmem:[#allocation2 + $0x20] sm:$0xff]
    %v35 = vld [vmem:[#allocation2 + $0x28] sm:$0xff]
    %v36 = vld [vmem:[#allocation2 + $0x30] sm:$0xff]
    %v37 = vld [vmem:[#allocation2 + $0x38] sm:$0xff]
    %v38 = vld [vmem:[#allocation2 + $0x40] sm:$0xff]
    %v39 = vld [vmem:[#allocation2 + $0x48] sm:$0xff]
    %v40 = vld [vmem:[#allocation2 + $0x50] sm:$0xff]
    %v41 = vld [vmem:[#allocation2 + $0x58] sm:$0xff]
    %v42 = vld [vmem:[#allocation2 + $0x60] sm:$0xff]
    %v43 = vld [vmem:[#allocation2 + $0x68] sm:$0xff]
    %v44 = vld [vmem:[#allocation2 + $0x70] sm:$0xff]
    %v45 = vld [vmem:[#allocation2 + $0x78] sm:$0xff]
    %v46 = vld [vmem:[#allocation2 + $0x80] sm:$0xff]
    %v47 = vld [vmem:[#allocation2 + $0x88] sm:$0xff]
    %v48 = vld [vmem:[#allocation2 + $0x90] sm:$0xff]
    %v49 = vld [vmem:[#allocation2 + $0x98] sm:$0xff]
    %v50 = vld [vmem:[#allocation2 + $0xa0] sm:$0xff]
    %v51 = vld [vmem:[#allocation2 + $0xa8] sm:$0xff]
    %v52 = vld [vmem:[#allocation2 + $0xb0] sm:$0xff]
    %v53 = vld [vmem:[#allocation2 + $0xb8] sm:$0xff]
    %v54 = vld [vmem:[#allocation2 + $0xc0] sm:$0xff]
    %v55 = vld [vmem:[#allocation2 + $0xc8] sm:$0xff]
    %v56 = vld [vmem:[#allocation2 + $0xd0] sm:$0xff]
    %v57 = vld [vmem:[#allocation2 + $0xd8] sm:$0xff]
    %v58 = vld [vmem:[#allocation2 + $0xe0] sm:$0xff]
    %v59 = vld [vmem:[#allocation2 + $0xe8] sm:$0xff]
    %v60 = vld [vmem:[#allocation2 + $0xf0] sm:$0xff]
    %v61 = vld [vmem:[#allocation2 + $0xf8] sm:$0xff]
    %v62 = vld [vmem:[#allocation2 + $0x100] sm:$0xff]
    %v63 = vld [vmem:[#allocation2 + $0x108] sm:$0xff]
    %v64 = vld [vmem:[#allocation2 + $0x110] sm:$0xff]
    %v65 = vld [vmem:[#allocation2 + $0x118] sm:$0xff]
    %v66 = vld [vmem:[#allocation2 + $0x120] sm:$0xff]
    %v67 = vld [vmem:[#allocation2 + $0x128] sm:$0xff]
    %v68 = vld [vmem:[#allocation2 + $0x130] sm:$0xff]
    %v69 = vld [vmem:[#allocation2 + $0x138] sm:$0xff]
    %v70 = vld [vmem:[#allocation2 + $0x140] sm:$0xff]
    %v71 = vld [vmem:[#allocation2 + $0x148] sm:$0xff]
    %v72 = vld [vmem:[#allocation2 + $0x150] sm:$0xff]
    %v73 = vld [vmem:[#allocation2 + $0x158] sm:$0xff]
    %v74 = vld [vmem:[#allocation2 + $0x160] sm:$0xff]
    %v75 = vld [vmem:[#allocation2 + $0x168] sm:$0xff]
    %v76 = vld [vmem:[#allocation2 + $0x170] sm:$0xff]
    %v77 = vld [vmem:[#allocation2 + $0x178] sm:$0xff]
    %v78 = vld [vmem:[#allocation2 + $0x180] sm:$0xff]
    %v79 = vld [vmem:[#allocation2 + $0x188] sm:$0xff]
    %v80 = vld [vmem:[#allocation2 + $0x190] sm:$0xff]
    %v81 = vld [vmem:[#allocation2 + $0x198] sm:$0xff]
    %v82 = vld [vmem:[#allocation2 + $0x1a0] sm:$0xff]
    %v83 = vld [vmem:[#allocation2 + $0x1a8] sm:$0xff]
    %v84 = vld [vmem:[#allocation2 + $0x1b0] sm:$0xff]
    %v85 = vld [vmem:[#allocation2 + $0x1b8] sm:$0xff]
    %v86 = vld [vmem:[#allocation2 + $0x1c0] sm:$0xff]
    %v87 = vld [vmem:[#allocation2 + $0x1c8] sm:$0xff]
    %v88 = vld [vmem:[#allocation2 + $0x1d0] sm:$0xff]
    %v89 = vld [vmem:[#allocation2 + $0x1d8] sm:$0xff]
    %v90 = vld [vmem:[#allocation2 + $0x1e0] sm:$0xff]
    %v91 = vld [vmem:[#allocation2 + $0x1e8] sm:$0xff]
    %v92 = vld [vmem:[#allocation2 + $0x1f0] sm:$0xff]
    %v93 = vld [vmem:[#allocation2 + $0x1f8] sm:$0xff]
    %s94 = sshra.s32 %s28, 7
    %s95 = sand.u32 %s28, 127
    %s96 = scalar_lea.vmem %s2, %s94
    %v97 = vld [vmem:[%s96] sm:$0xf]
    %v99 = vlaneseq
    %v100 = vshrl.u32 %v99, 7
    %v101 = vsub.s32 0, %v100
    %v102 = vrot.slane %v97, %v101
    %v103 = vlaneseq
    %v104 = vshrl.u32 %v103, 7
    %v105 = vsub.s32 1, %v104
    %v106 = vrot.slane %v97, %v105
    %v107 = vlaneseq
    %v108 = vshrl.u32 %v107, 7
    %v109 = vsub.s32 2, %v108
    %v110 = vrot.slane %v97, %v109
    %v111 = vlaneseq
    %v112 = vshrl.u32 %v111, 7
    %v113 = vsub.s32 3, %v112
    %v114 = vrot.slane %v97, %v113
    %v120 = vunpack.c.l.b16 %v29
    %v121 = vunpack.c.h.b16 %v29
    %v122 = vpack.c.b16 %v120, %v120
    %v123 = vpack.c.b16 %v121, %v121
    %v190 = vunpack.c.l.b16 %v30
    %v191 = vunpack.c.h.b16 %v30
    %v192 = vunpack.c.l.b16 %v31
    %v193 = vunpack.c.h.b16 %v31
    %v194 = vunpack.c.l.b16 %v32
    %v195 = vunpack.c.h.b16 %v32
    %v196 = vunpack.c.l.b16 %v33
    %v197 = vunpack.c.h.b16 %v33
    %v198 = vunpack.c.l.b16 %v34
    %v199 = vunpack.c.h.b16 %v34
    %v200 = vunpack.c.l.b16 %v35
    %v201 = vunpack.c.h.b16 %v35
    %v202 = vunpack.c.l.b16 %v36
    %v203 = vunpack.c.h.b16 %v36
    %v204 = vunpack.c.l.b16 %v37
    %v205 = vunpack.c.h.b16 %v37
    %v206 = vunpack.c.l.b16 %v38
    %v207 = vunpack.c.h.b16 %v38
    %v208 = vunpack.c.l.b16 %v39
    %v209 = vunpack.c.h.b16 %v39
    %v210 = vunpack.c.l.b16 %v40
    %v211 = vunpack.c.h.b16 %v40
    %v212 = vunpack.c.l.b16 %v41
    %v213 = vunpack.c.h.b16 %v41
    %v214 = vunpack.c.l.b16 %v42
    %v215 = vunpack.c.h.b16 %v42
    %v216 = vunpack.c.l.b16 %v43
    %v217 = vunpack.c.h.b16 %v43
    %v218 = vunpack.c.l.b16 %v44
    %v219 = vunpack.c.h.b16 %v44
    %v220 = vunpack.c.l.b16 %v45
    %v221 = vunpack.c.h.b16 %v45
    %v222 = vunpack.c.l.b16 %v46
    %v223 = vunpack.c.h.b16 %v46
    %v224 = vunpack.c.l.b16 %v47
    %v225 = vunpack.c.h.b16 %v47
    %v226 = vunpack.c.l.b16 %v48
    %v227 = vunpack.c.h.b16 %v48
    %v228 = vunpack.c.l.b16 %v49
    %v229 = vunpack.c.h.b16 %v49
    %v230 = vunpack.c.l.b16 %v50
    %v231 = vunpack.c.h.b16 %v50
    %v232 = vunpack.c.l.b16 %v51
    %v233 = vunpack.c.h.b16 %v51
    %v234 = vunpack.c.l.b16 %v52
    %v235 = vunpack.c.h.b16 %v52
    %v236 = vunpack.c.l.b16 %v53
    %v237 = vunpack.c.h.b16 %v53
    %v238 = vunpack.c.l.b16 %v54
    %v239 = vunpack.c.h.b16 %v54
    %v240 = vunpack.c.l.b16 %v55
    %v241 = vunpack.c.h.b16 %v55
    %v242 = vunpack.c.l.b16 %v56
    %v243 = vunpack.c.h.b16 %v56
    %v244 = vunpack.c.l.b16 %v57
    %v245 = vunpack.c.h.b16 %v57
    %v246 = vunpack.c.l.b16 %v58
    %v247 = vunpack.c.h.b16 %v58
    %v248 = vunpack.c.l.b16 %v59
    %v249 = vunpack.c.h.b16 %v59
    %v250 = vunpack.c.l.b16 %v60
    %v251 = vunpack.c.h.b16 %v60
    %v252 = vunpack.c.l.b16 %v61
    %v253 = vunpack.c.h.b16 %v61
    %v254 = vunpack.c.l.b16 %v62
    %v255 = vunpack.c.h.b16 %v62
    %v256 = vunpack.c.l.b16 %v63
    %v257 = vunpack.c.h.b16 %v63
    %v258 = vunpack.c.l.b16 %v64
    %v259 = vunpack.c.h.b16 %v64
    %v260 = vunpack.c.l.b16 %v65
    %v261 = vunpack.c.h.b16 %v65
    %v262 = vunpack.c.l.b16 %v66
    %v263 = vunpack.c.h.b16 %v66
    %v264 = vunpack.c.l.b16 %v67
    %v265 = vunpack.c.h.b16 %v67
    %v266 = vunpack.c.l.b16 %v68
    %v267 = vunpack.c.h.b16 %v68
    %v268 = vunpack.c.l.b16 %v69
    %v269 = vunpack.c.h.b16 %v69
    %v270 = vunpack.c.l.b16 %v70
    %v271 = vunpack.c.h.b16 %v70
    %v272 = vunpack.c.l.b16 %v71
    %v273 = vunpack.c.h.b16 %v71
    %v274 = vunpack.c.l.b16 %v72
    %v275 = vunpack.c.h.b16 %v72
    %v276 = vunpack.c.l.b16 %v73
    %v277 = vunpack.c.h.b16 %v73
    %v278 = vunpack.c.l.b16 %v74
    %v279 = vunpack.c.h.b16 %v74
    %v280 = vunpack.c.l.b16 %v75
    %v281 = vunpack.c.h.b16 %v75
    %v282 = vunpack.c.l.b16 %v76
    %v283 = vunpack.c.h.b16 %v76
    %v284 = vunpack.c.l.b16 %v77
    %v285 = vunpack.c.h.b16 %v77
    %v286 = vunpack.c.l.b16 %v78
    %v287 = vunpack.c.h.b16 %v78
    %v288 = vunpack.c.l.b16 %v79
    %v289 = vunpack.c.h.b16 %v79
    %v290 = vunpack.c.l.b16 %v80
    %v291 = vunpack.c.h.b16 %v80
    %v292 = vunpack.c.l.b16 %v81
    %v293 = vunpack.c.h.b16 %v81
    %v294 = vunpack.c.l.b16 %v82
    %v295 = vunpack.c.h.b16 %v82
    %v296 = vunpack.c.l.b16 %v83
    %v297 = vunpack.c.h.b16 %v83
    %v298 = vunpack.c.l.b16 %v84
    %v299 = vunpack.c.h.b16 %v84
    %v300 = vunpack.c.l.b16 %v85
    %v301 = vunpack.c.h.b16 %v85
    %v302 = vunpack.c.l.b16 %v86
    %v303 = vunpack.c.h.b16 %v86
    %v304 = vunpack.c.l.b16 %v87
    %v305 = vunpack.c.h.b16 %v87
    %v306 = vunpack.c.l.b16 %v88
    %v307 = vunpack.c.h.b16 %v88
    %v308 = vunpack.c.l.b16 %v89
    %v309 = vunpack.c.h.b16 %v89
    %v310 = vunpack.c.l.b16 %v90
    %v311 = vunpack.c.h.b16 %v90
    %v312 = vunpack.c.l.b16 %v91
    %v313 = vunpack.c.h.b16 %v91
    %v314 = vunpack.c.l.b16 %v92
    %v315 = vunpack.c.h.b16 %v92
    %v316 = vunpack.c.l.b16 %v93
    %v317 = vunpack.c.h.b16 %v93
    %v318 = vpack.c.b16 %v194, %v190
    %v319 = vpack.c.b16 %v195, %v191
    %v320 = vpack.c.b16 %v196, %v192
    %v321 = vpack.c.b16 %v197, %v193
    %v322 = vpack.c.b16 %v202, %v198
    %v323 = vpack.c.b16 %v203, %v199
    %v324 = vpack.c.b16 %v204, %v200
    %v325 = vpack.c.b16 %v205, %v201
    %v326 = vpack.c.b16 %v210, %v206
    %v327 = vpack.c.b16 %v211, %v207
    %v328 = vpack.c.b16 %v212, %v208
    %v329 = vpack.c.b16 %v213, %v209
    %v330 = vpack.c.b16 %v218, %v214
    %v331 = vpack.c.b16 %v219, %v215
    %v332 = vpack.c.b16 %v220, %v216
    %v333 = vpack.c.b16 %v221, %v217
    %v334 = vpack.c.b16 %v226, %v222
    %v335 = vpack.c.b16 %v227, %v223
    %v336 = vpack.c.b16 %v228, %v224
    %v337 = vpack.c.b16 %v229, %v225
    %v338 = vpack.c.b16 %v234, %v230
    %v339 = vpack.c.b16 %v235, %v231
    %v340 = vpack.c.b16 %v236, %v232
    %v341 = vpack.c.b16 %v237, %v233
    %v342 = vpack.c.b16 %v242, %v238
    %v343 = vpack.c.b16 %v243, %v239
    %v344 = vpack.c.b16 %v244, %v240
    %v345 = vpack.c.b16 %v245, %v241
    %v346 = vpack.c.b16 %v250, %v246
    %v347 = vpack.c.b16 %v251, %v247
    %v348 = vpack.c.b16 %v252, %v248
    %v349 = vpack.c.b16 %v253, %v249
    %v350 = vpack.c.b16 %v258, %v254
    %v351 = vpack.c.b16 %v259, %v255
    %v352 = vpack.c.b16 %v260, %v256
    %v353 = vpack.c.b16 %v261, %v257
    %v354 = vpack.c.b16 %v266, %v262
    %v355 = vpack.c.b16 %v267, %v263
    %v356 = vpack.c.b16 %v268, %v264
    %v357 = vpack.c.b16 %v269, %v265
    %v358 = vpack.c.b16 %v274, %v270
    %v359 = vpack.c.b16 %v275, %v271
    %v360 = vpack.c.b16 %v276, %v272
    %v361 = vpack.c.b16 %v277, %v273
    %v362 = vpack.c.b16 %v282, %v278
    %v363 = vpack.c.b16 %v283, %v279
    %v364 = vpack.c.b16 %v284, %v280
    %v365 = vpack.c.b16 %v285, %v281
    %v366 = vpack.c.b16 %v290, %v286
    %v367 = vpack.c.b16 %v291, %v287
    %v368 = vpack.c.b16 %v292, %v288
    %v369 = vpack.c.b16 %v293, %v289
    %v370 = vpack.c.b16 %v298, %v294
    %v371 = vpack.c.b16 %v299, %v295
    %v372 = vpack.c.b16 %v300, %v296
    %v373 = vpack.c.b16 %v301, %v297
    %v374 = vpack.c.b16 %v306, %v302
    %v375 = vpack.c.b16 %v307, %v303
    %v376 = vpack.c.b16 %v308, %v304
    %v377 = vpack.c.b16 %v309, %v305
    %v378 = vpack.c.b16 %v314, %v310
    %v379 = vpack.c.b16 %v315, %v311
    %v380 = vpack.c.b16 %v316, %v312
    %v381 = vpack.c.b16 %v317, %v313
    %446 = vmatprep.subr.bf16.mxu0 %v319
    %447 = vmatpush1.bf16.msra.mxu0 %v318
    %448 = vmatprep.subr.bf16.mxu0 %v323
    %449 = vmatpush1.bf16.msra.mxu0 %v322
    %450 = vmatprep.subr.bf16.mxu0 %v327
    %451 = vmatpush1.bf16.msra.mxu0 %v326
    %452 = vmatprep.subr.bf16.mxu0 %v331
    %453 = vmatpush1.bf16.msra.mxu0 %v330
    %454 = vmatprep.subr.bf16.mxu0 %v335
    %455 = vmatpush1.bf16.msra.mxu0 %v334
    %456 = vmatprep.subr.bf16.mxu0 %v339
    %457 = vmatpush1.bf16.msra.mxu0 %v338
    %458 = vmatprep.subr.bf16.mxu0 %v343
    %459 = vmatpush1.bf16.msra.mxu0 %v342
    %460 = vmatprep.subr.bf16.mxu0 %v347
    %461 = vmatpush1.bf16.msra.mxu0 %v346
    %462 = vmatprep.subr.bf16.mxu0 %v351
    %463 = vmatpush1.bf16.msra.mxu0 %v350
    %464 = vmatprep.subr.bf16.mxu0 %v355
    %465 = vmatpush1.bf16.msra.mxu0 %v354
    %466 = vmatprep.subr.bf16.mxu0 %v359
    %467 = vmatpush1.bf16.msra.mxu0 %v358
    %468 = vmatprep.subr.bf16.mxu0 %v363
    %469 = vmatpush1.bf16.msra.mxu0 %v362
    %470 = vmatprep.subr.bf16.mxu0 %v367
    %471 = vmatpush1.bf16.msra.mxu0 %v366
    %472 = vmatprep.subr.bf16.mxu0 %v371
    %473 = vmatpush1.bf16.msra.mxu0 %v370
    %474 = vmatprep.subr.bf16.mxu0 %v375
    %475 = vmatpush1.bf16.msra.mxu0 %v374
    %476 = vmatprep.subr.bf16.mxu0 %v379
    %477 = vmatpush1.bf16.msra.mxu0 %v378
    %478 = vmatprep.mubr.bf16.mxu0 %v123
    %479 = vmatmul.mubr.bf16.gmra.mrb[0].mxu0 %v122
    %v480 = vpop.f32.mrb[0].mxu0
    %v481 = vadd.f32 %v102, %v480
    %v482 = vpop.f32.mrb[0].mxu0
    %v483 = vadd.f32 %v106, %v482
    %v484 = vpop.f32.mrb[0].mxu0
    %v485 = vpop.f32.mrb[0].mxu0
    %486 = vdwg.mxu0
    %487 = vmatprep.subr.bf16.mxu0 %v321
    %488 = vmatpush1.bf16.msra.mxu0 %v320
    %489 = vmatprep.subr.bf16.mxu0 %v325
    %490 = vmatpush1.bf16.msra.mxu0 %v324
    %491 = vmatprep.subr.bf16.mxu0 %v329
    %492 = vmatpush1.bf16.msra.mxu0 %v328
    %493 = vmatprep.subr.bf16.mxu0 %v333
    %494 = vmatpush1.bf16.msra.mxu0 %v332
    %495 = vmatprep.subr.bf16.mxu0 %v337
    %496 = vmatpush1.bf16.msra.mxu0 %v336
    %497 = vmatprep.subr.bf16.mxu0 %v341
    %498 = vmatpush1.bf16.msra.mxu0 %v340
    %499 = vmatprep.subr.bf16.mxu0 %v345
    %500 = vmatpush1.bf16.msra.mxu0 %v344
    %501 = vmatprep.subr.bf16.mxu0 %v349
    %502 = vmatpush1.bf16.msra.mxu0 %v348
    %503 = vmatprep.subr.bf16.mxu0 %v353
    %504 = vmatpush1.bf16.msra.mxu0 %v352
    %505 = vmatprep.subr.bf16.mxu0 %v357
    %506 = vmatpush1.bf16.msra.mxu0 %v356
    %507 = vmatprep.subr.bf16.mxu0 %v361
    %508 = vmatpush1.bf16.msra.mxu0 %v360
    %509 = vmatprep.subr.bf16.mxu0 %v365
    %510 = vmatpush1.bf16.msra.mxu0 %v364
    %511 = vmatprep.subr.bf16.mxu0 %v369
    %512 = vmatpush1.bf16.msra.mxu0 %v368
    %513 = vmatprep.subr.bf16.mxu0 %v373
    %514 = vmatpush1.bf16.msra.mxu0 %v372
    %515 = vmatprep.subr.bf16.mxu0 %v377
    %516 = vmatpush1.bf16.msra.mxu0 %v376
    %517 = vmatprep.subr.bf16.mxu0 %v381
    %518 = vmatpush1.bf16.msra.mxu0 %v380
    %519 = vmatprep.mubr.bf16.mxu0 %v123
    %520 = vmatmul.mubr.bf16.gmra.mrb[0].mxu0 %v122
    %v521 = vpop.f32.mrb[0].mxu0
    %v522 = vadd.f32 %v110, %v521
    %v523 = vpop.f32.mrb[0].mxu0
    %v524 = vadd.f32 %v114, %v523
    %v525 = vpop.f32.mrb[0].mxu0
    %v526 = vpop.f32.mrb[0].mxu0
    %527 = vdwg.mxu0
    %528 = vst [vmem:[%s3] sm:$0xff] %v481
    %529 = vst [vmem:[%s3 + $0x8] sm:$0xff] %v483
    %530 = vst [vmem:[%s3 + $0x10] sm:$0xff] %v522
    %531 = vst [vmem:[%s3 + $0x18] sm:$0xff] %v524
    // Predicated region
    $region18: #{conv_bn_forward.3} parent=1 // pred_check
      _
    $region19: #{conv_bn_forward.3} parent=1 // pred_check_branch
      %533 = sbr.rel (0) target = $region21
    $region20: #{conv_bn_forward.3} parent=1 // pred_region
      _
    $region21: #{conv_bn_forward.3} parent=1 // pred_fallthru
      _
    // Predicated region
    $region22: #{conv_bn_forward.3} parent=1 // pred_check
      _
    $region23: #{conv_bn_forward.3} parent=1 // pred_check_branch
      %535 = sbr.rel (0) target = $region25
    $region24: #{conv_bn_forward.3} parent=1 // pred_region
      _
    $region25: #{conv_bn_forward.3} parent=1 // pred_fallthru
      _
    %536 = vsyncpa [#allocation3], 1

</llo_original>
